<compile_context>
chip_gen: v6e
topology: v6e:2x2x1
jax: 0.10.0
libtpu: 0.0.40
codegen_flags: <defaults>
</compile_context>

<pallas_src>
import jax
import jax.numpy as jnp
from jax import lax
from jax.experimental import pallas as pl
from jax.experimental.pallas import tpu as pltpu


# ~2 MiB per input block; with the output block and double buffering this is
# ~8 MiB of VMEM — inside the default scoped limit on v5e (16 MiB) and
# v6e/v7x (32 MiB), with pipelining headroom.
_TARGET_BLOCK_BYTES = 2 * 1024 * 1024


def _adjust_saturation_kernel(factor_ref, x_ref, o_ref):
    # factor_ref: SMEM (1,) float32 scalar.
    # x_ref / o_ref: VMEM (bn, 3, tr, L) blocks.
    dt = x_ref.dtype
    f32 = factor_ref[0]
    f = f32.astype(dt)
    gray_scale = (1.0 - f32).astype(dt)          # hoisted (1 - factor)

    # Channel planes as ref views (static slices → zero-cost, no full-tile load).
    r = x_ref[:, 0, :, :]
    g = x_ref[:, 1, :, :]
    b = x_ref[:, 2, :, :]

    # (1 - f) * gray computed once, reused for all three channels.
    gray_s = gray_scale * (0.2989 * r + 0.587 * g + 0.114 * b)

    o_ref[:, 0, :, :] = jnp.clip(f * r + gray_s, 0.0, 1.0)
    o_ref[:, 1, :, :] = jnp.clip(f * g + gray_s, 0.0, 1.0)
    o_ref[:, 2, :, :] = jnp.clip(f * b + gray_s, 0.0, 1.0)


def _choose_tiling(n, r_dim, l_dim, itemsize):
    """Pick (batch_block, row_block) so one input block is ~_TARGET_BLOCK_BYTES."""
    row_bytes = 3 * l_dim * itemsize               # one spatial row, all channels
    rows_for_target = max(1, _TARGET_BLOCK_BYTES // row_bytes)
    if rows_for_target >= r_dim:
        # Whole (reshaped) image fits in one block: pack batch elements instead.
        img_bytes = r_dim * row_bytes
        bn = int(min(n, max(1, _TARGET_BLOCK_BYTES // img_bytes)))
        return bn, r_dim
    # Tile rows; keep the sublane dim a multiple of 8 (layout requirement).
    tr = min(r_dim, max(8, (rows_for_target // 8) * 8))
    return 1, tr


def adjust_saturation_pallas(x: jax.Array, factor) -> jax.Array:
    """x: (N, 3, H, W) float image batch in [0, 1]. factor: scalar (traced ok)."""
    n, c, h, w = x.shape
    assert c == 3, "adjust_saturation expects RGB input (C == 3)"
    # TODO(synk): integer (uint8) images would need /255 scaling and a 255 clamp
    # bound; this kernel assumes float images already scaled to [0, 1].

    p = h * w
    if p % 128 == 0:
        # Lane-dense view: exactly 128 lanes, dense sublane rows per channel.
        r_dim, l_dim = p // 128, 128
    else:
        # Fallback: W on lanes (full dim; may pad to the next 128 multiple).
        r_dim, l_dim = h, w
    xr = x.reshape(n, c, r_dim, l_dim)

    bn, tr = _choose_tiling(n, r_dim, l_dim, x.dtype.itemsize)
    block = (bn, c, tr, l_dim)
    grid = (pl.cdiv(n, bn), pl.cdiv(r_dim, tr))

    factor_arr = jnp.asarray(factor, dtype=jnp.float32).reshape((1,))
    out = pl.pallas_call(
        _adjust_saturation_kernel,
        out_shape=jax.ShapeDtypeStruct(xr.shape, x.dtype),
        grid=grid,
        in_specs=[
            pl.BlockSpec(memory_space=pltpu.SMEM),                   # factor scalar
            pl.BlockSpec(block, lambda i, j: (i, 0, j, 0)),          # image tiles
        ],
        out_specs=pl.BlockSpec(block, lambda i, j: (i, 0, j, 0)),
        compiler_params=pltpu.CompilerParams(
            dimension_semantics=("parallel", "parallel"),
            vmem_limit_bytes=32 * 1024 * 1024,
        ),
    )(factor_arr, xr)
    return out.reshape(x.shape)


class RandomSaturationWithVariation:
    """JAX/Pallas port of the PyTorch module. Randomness comes from an explicit
    PRNG key; the gate and factor jitter are traced (jit/vmap friendly), and the
    per-pixel saturation blend runs in the Pallas kernel."""

    def __init__(self, factor: float, p: float, factor_variation: float) -> None:
        self.factor = float(factor)
        self.p = float(p)
        self.factor_variation = float(factor_variation)

    def __call__(self, x: jax.Array, key: jax.Array) -> jax.Array:
        k_apply, k_noise = jax.random.split(key)
        coin = jax.random.uniform(k_apply, ())
        noise = (jax.random.uniform(k_noise, ()) * (2.0 * self.factor_variation)
                 - self.factor_variation)
        factor = jnp.clip(self.factor + noise, 0.1, 2.0)
        # Same gate as `if torch.rand(1) >= p: return x`, but traced (no host sync).
        return lax.cond(
            coin < self.p,
            lambda img: adjust_saturation_pallas(img, factor),
            lambda img: img,
            x,
        )


# TODO(synk): BirderAugment's other ops (RandomAffine, ColorJitter, GaussianBlur,
# RandomPosterize, RandomAutocontrast, adjust_sharpness, solarize, RandomErasing)
# and its random op selection are separate transforms / host-side composition;
# only the RandomSaturationWithVariation hot path is implemented here.


if __name__ == "__main__":
    key = jax.random.PRNGKey(0)
    k_img, k_mod = jax.random.split(key)

    # Small deterministic input: batch=2, RGB, 16x16 spatial, values in [0, 1].
    x = jax.random.uniform(k_img, (2, 3, 16, 16), dtype=jnp.float32)

    # p=1.0 so the transform always applies (deterministic path through kernel).
    module = RandomSaturationWithVariation(factor=1.5, p=1.0, factor_variation=0.25)
    apply_fn = jax.jit(module.__call__)          # jit-compatible now (no host sync)
    out = jax.block_until_ready(apply_fn(x, k_mod))

    # Pure-JAX reference reproducing the same RNG draws.
    _, k_noise = jax.random.split(k_mod)
    noise = jax.random.uniform(k_noise, ()) * (2.0 * 0.25) - 0.25
    f = jnp.clip(1.5 + noise, 0.1, 2.0)
    gray = 0.2989 * x[:, 0] + 0.587 * x[:, 1] + 0.114 * x[:, 2]
    ref = jnp.clip(f * x + (1.0 - f) * gray[:, None], 0.0, 1.0)

    assert out.shape == x.shape and out.dtype == x.dtype
    assert float(jnp.max(jnp.abs(out - ref))) < 1e-5

    print("KERNEL_OK")
</pallas_src>

<mosaic_0001>
module attributes {stable_mosaic.version = 11 : i64} {
  func.func @_adjust_saturation_kernel(%arg0: i32, %arg1: i32, %arg2: memref<1xf32, #tpu.memory_space<smem>>, %arg3: memref<2x3x2x128xf32, #tpu.memory_space<vmem>>, %arg4: memref<2x3x2x128xf32, #tpu.memory_space<vmem>>) attributes {dimension_semantics = [#tpu.dimension_semantics<parallel>, #tpu.dimension_semantics<parallel>], iteration_bounds = array<i64: 1, 1>, scalar_prefetch = 0 : i64, scratch_operands = 0 : i64, tpu.core_type = #tpu.core_type<tc>, window_params = [{transform_indices = @transform_0, window_bounds = array<i64: 1>}, {transform_indices = @transform_1, window_bounds = array<i64: 2, 3, 2, 128>}, {transform_indices = @transform_2, window_bounds = array<i64: 2, 3, 2, 128>}]} {
    %c0 = arith.constant 0 : index
    %0 = memref.load %arg2[%c0] : memref<1xf32, #tpu.memory_space<smem>>
    %cst = arith.constant 1.000000e+00 : f32
    %1 = arith.subf %cst, %0 : f32
    %c0_0 = arith.constant 0 : index
    %c0_1 = arith.constant 0 : index
    %c0_2 = arith.constant 0 : index
    %c0_3 = arith.constant 0 : index
    %2 = vector.load %arg3[%c0_0, %c0_1, %c0_2, %c0_3] : memref<2x3x2x128xf32, #tpu.memory_space<vmem>>, vector<2x1x2x128xf32>
    %3 = vector.shape_cast %2 : vector<2x1x2x128xf32> to vector<2x2x128xf32>
    %c0_4 = arith.constant 0 : index
    %c1 = arith.constant 1 : index
    %c0_5 = arith.constant 0 : index
    %c0_6 = arith.constant 0 : index
    %4 = vector.load %arg3[%c0_4, %c1, %c0_5, %c0_6] : memref<2x3x2x128xf32, #tpu.memory_space<vmem>>, vector<2x1x2x128xf32>
    %5 = vector.shape_cast %4 : vector<2x1x2x128xf32> to vector<2x2x128xf32>
    %c0_7 = arith.constant 0 : index
    %c2 = arith.constant 2 : index
    %c0_8 = arith.constant 0 : index
    %c0_9 = arith.constant 0 : index
    %6 = vector.load %arg3[%c0_7, %c2, %c0_8, %c0_9] : memref<2x3x2x128xf32, #tpu.memory_space<vmem>>, vector<2x1x2x128xf32>
    %7 = vector.shape_cast %6 : vector<2x1x2x128xf32> to vector<2x2x128xf32>
    %cst_10 = arith.constant 2.989000e-01 : f32
    %8 = vector.broadcast %cst_10 : f32 to vector<2x2x128xf32>
    %9 = arith.mulf %8, %3 : vector<2x2x128xf32>
    %cst_11 = arith.constant 5.870000e-01 : f32
    %10 = vector.broadcast %cst_11 : f32 to vector<2x2x128xf32>
    %11 = arith.mulf %10, %5 : vector<2x2x128xf32>
    %12 = arith.addf %9, %11 : vector<2x2x128xf32>
    %cst_12 = arith.constant 1.140000e-01 : f32
    %13 = vector.broadcast %cst_12 : f32 to vector<2x2x128xf32>
    %14 = arith.mulf %13, %7 : vector<2x2x128xf32>
    %15 = arith.addf %12, %14 : vector<2x2x128xf32>
    %16 = vector.broadcast %1 : f32 to vector<2x2x128xf32>
    %17 = arith.mulf %16, %15 : vector<2x2x128xf32>
    %18 = vector.broadcast %0 : f32 to vector<2x2x128xf32>
    %19 = arith.mulf %18, %3 : vector<2x2x128xf32>
    %20 = arith.addf %19, %17 : vector<2x2x128xf32>
    %cst_13 = arith.constant 0.000000e+00 : f32
    %cst_14 = arith.constant 1.000000e+00 : f32
    %21 = vector.broadcast %cst_13 : f32 to vector<2x2x128xf32>
    %22 = arith.maximumf %21, %20 : vector<2x2x128xf32>
    %23 = vector.broadcast %cst_14 : f32 to vector<2x2x128xf32>
    %24 = arith.minimumf %23, %22 : vector<2x2x128xf32>
    %c0_15 = arith.constant 0 : index
    %c0_16 = arith.constant 0 : index
    %c0_17 = arith.constant 0 : index
    %c0_18 = arith.constant 0 : index
    %25 = vector.load %arg4[%c0_15, %c0_16, %c0_17, %c0_18] : memref<2x3x2x128xf32, #tpu.memory_space<vmem>>, vector<2x1x2x128xf32>
    %26 = vector.shape_cast %25 : vector<2x1x2x128xf32> to vector<2x2x128xf32>
    %27 = vector.shape_cast %24 : vector<2x2x128xf32> to vector<2x1x2x128xf32>
    tpu.vector_store %arg4[%c0_15, %c0_16, %c0_17, %c0_18], %27 {strides = array<i32>} : memref<2x3x2x128xf32, #tpu.memory_space<vmem>>, vector<2x1x2x128xf32>,
    %28 = vector.broadcast %0 : f32 to vector<2x2x128xf32>
    %29 = arith.mulf %28, %5 : vector<2x2x128xf32>
    %30 = arith.addf %29, %17 : vector<2x2x128xf32>
    %cst_19 = arith.constant 0.000000e+00 : f32
    %cst_20 = arith.constant 1.000000e+00 : f32
    %31 = vector.broadcast %cst_19 : f32 to vector<2x2x128xf32>
    %32 = arith.maximumf %31, %30 : vector<2x2x128xf32>
    %33 = vector.broadcast %cst_20 : f32 to vector<2x2x128xf32>
    %34 = arith.minimumf %33, %32 : vector<2x2x128xf32>
    %c0_21 = arith.constant 0 : index
    %c1_22 = arith.constant 1 : index
    %c0_23 = arith.constant 0 : index
    %c0_24 = arith.constant 0 : index
    %35 = vector.load %arg4[%c0_21, %c1_22, %c0_23, %c0_24] : memref<2x3x2x128xf32, #tpu.memory_space<vmem>>, vector<2x1x2x128xf32>
    %36 = vector.shape_cast %35 : vector<2x1x2x128xf32> to vector<2x2x128xf32>
    %37 = vector.shape_cast %34 : vector<2x2x128xf32> to vector<2x1x2x128xf32>
    tpu.vector_store %arg4[%c0_21, %c1_22, %c0_23, %c0_24], %37 {strides = array<i32>} : memref<2x3x2x128xf32, #tpu.memory_space<vmem>>, vector<2x1x2x128xf32>,
    %38 = vector.broadcast %0 : f32 to vector<2x2x128xf32>
    %39 = arith.mulf %38, %7 : vector<2x2x128xf32>
    %40 = arith.addf %39, %17 : vector<2x2x128xf32>
    %cst_25 = arith.constant 0.000000e+00 : f32
    %cst_26 = arith.constant 1.000000e+00 : f32
    %41 = vector.broadcast %cst_25 : f32 to vector<2x2x128xf32>
    %42 = arith.maximumf %41, %40 : vector<2x2x128xf32>
    %43 = vector.broadcast %cst_26 : f32 to vector<2x2x128xf32>
    %44 = arith.minimumf %43, %42 : vector<2x2x128xf32>
    %c0_27 = arith.constant 0 : index
    %c2_28 = arith.constant 2 : index
    %c0_29 = arith.constant 0 : index
    %c0_30 = arith.constant 0 : index
    %45 = vector.load %arg4[%c0_27, %c2_28, %c0_29, %c0_30] : memref<2x3x2x128xf32, #tpu.memory_space<vmem>>, vector<2x1x2x128xf32>
    %46 = vector.shape_cast %45 : vector<2x1x2x128xf32> to vector<2x2x128xf32>
    %47 = vector.shape_cast %44 : vector<2x2x128xf32> to vector<2x1x2x128xf32>
    tpu.vector_store %arg4[%c0_27, %c2_28, %c0_29, %c0_30], %47 {strides = array<i32>} : memref<2x3x2x128xf32, #tpu.memory_space<vmem>>, vector<2x1x2x128xf32>,
    return
  }
  func.func @transform_0(%arg0: i32, %arg1: i32) -> i32 {
    %c0_i32 = arith.constant 0 : i32
    %c0_i32_0 = arith.constant 0 : i32
    return %c0_i32 : i32
  }
  func.func @transform_1(%arg0: i32, %arg1: i32) -> (i32, i32, i32, i32) {
    %c0_i32 = arith.constant 0 : i32
    %c0_i32_0 = arith.constant 0 : i32
    %c0_i32_1 = arith.constant 0 : i32
    return %arg0, %c0_i32, %arg1, %c0_i32_0 : i32, i32, i32, i32
  }
  func.func @transform_2(%arg0: i32, %arg1: i32) -> (i32, i32, i32, i32) {
    %c0_i32 = arith.constant 0 : i32
    %c0_i32_0 = arith.constant 0 : i32
    %c0_i32_1 = arith.constant 0 : i32
    return %arg0, %c0_i32, %arg1, %c0_i32_0 : i32, i32, i32, i32
  }
}

</mosaic_0001>

<llo_original>
// kernel: branch_1_fun.1
$region0: #{branch_1_fun.1}
  #allocation0 [shape = 'u32[]', space=smem, size = 0x4, offset = 0x4, fixed_abs, tag = 'smem constant byte address 0x4 - core index']
  #allocation1 [shape = 'u32[144,128]{1,0:T(1,128)}', space=vmem, size = 0x12000, scoped, tag = 'internal scratch']
  #allocation2 [shape = 'f32[1]{0:T(128)S(6)}', space=smem, size = 0x200, scoped, tag = 'scoped memory for branch_1_fun.1']
  %s0 = inlined_call_operand.<no memory space> [shape: f32[1], index: 0, kind: input, shape index: {}]
  %s1 = inlined_call_operand.vmem [shape: f32[2,3,2,128], index: 1, kind: input, shape index: {}]
  %s2 = inlined_call_operand.vmem [shape: f32[2,3,2,128], index: 2, kind: output, shape index: {}]
  %s3 = sld [smem:[#allocation0]]
  $region18: #{branch_1_fun.1} parent=0
    _
  %s5 = ssub.s32 1, %s3
  %s6 = scalar_select 0, %s5, %s3
  %7 = sst [smem:[#allocation2]] %s0
  // Predicated region
  $region2: #{branch_1_fun.1} parent=0 // pred_check
    _
  $region3: #{branch_1_fun.1} parent=0 // pred_check_branch
    %9 = sbr.rel (0) target = $region5
  $region4: #{branch_1_fun.1} parent=0 // pred_region
    _
  $region5: #{branch_1_fun.1} parent=0 // pred_fallthru
    _
  // Predicated region
  $region6: #{branch_1_fun.1} parent=0 // pred_check
    _
  $region7: #{branch_1_fun.1} parent=0 // pred_check_branch
    %11 = sbr.rel (0) target = $region9
  $region8: #{branch_1_fun.1} parent=0 // pred_region
    _
  $region9: #{branch_1_fun.1} parent=0 // pred_fallthru
    _
  %s12 = sld [smem:[#allocation2]]
  %s13 = ssub.f32 1.0, %s12
  %v14 = vld [vmem:[%s1] sm:$0x3]
  %v15 = vld [vmem:[%s1 + $0x6] sm:$0x3]
  %s16 = scalar_lea.vmem %s1, 2
  %v17 = vld [vmem:[%s16] sm:$0x3]
  %v18 = vld [vmem:[%s16 + $0x6] sm:$0x3]
  %s19 = scalar_lea.vmem %s1, 4
  %v20 = vld [vmem:[%s19] sm:$0x3]
  %v21 = vld [vmem:[%s19 + $0x6] sm:$0x3]
  %v22 = vmul.f32 %v14, 0.2989
  %v23 = vmul.f32 %v15, 0.2989
  %v24 = vmul.f32 %v17, 0.587
  %v25 = vmul.f32 %v18, 0.587
  %v26 = vadd.f32 %v22, %v24
  %v27 = vadd.f32 %v23, %v25
  %v28 = vmul.f32 %v20, 0.114
  %v29 = vmul.f32 %v21, 0.114
  %v30 = vadd.f32 %v26, %v28
  %v31 = vadd.f32 %v27, %v29
  %v32 = vstv %s13
  %v33 = vmul.f32 %v32, %v30
  %v34 = vmul.f32 %v32, %v31
  %v35 = vstv %s12
  %v36 = vmul.f32 %v35, %v14
  %v37 = vmul.f32 %v35, %v15
  %v38 = vadd.f32 %v36, %v33
  %v39 = vadd.f32 %v37, %v34
  %v40 = vmax.f32 %v38, 0.0
  %v41 = vmax.f32 %v39, 0.0
  %v42 = vmin.f32 %v40, 1.0
  %v43 = vmin.f32 %v41, 1.0
  %44 = vst [vmem:[%s2] sm:$0x3] %v42
  %45 = vst [vmem:[%s2 + $0x6] sm:$0x3] %v43
  %v46 = vmul.f32 %v35, %v17
  %v47 = vmul.f32 %v35, %v18
  %v48 = vadd.f32 %v46, %v33
  %v49 = vadd.f32 %v47, %v34
  %v50 = vmax.f32 %v48, 0.0
  %v51 = vmax.f32 %v49, 0.0
  %v52 = vmin.f32 %v50, 1.0
  %v53 = vmin.f32 %v51, 1.0
  %s54 = scalar_lea.vmem %s2, 2
  %55 = vst [vmem:[%s54] sm:$0x3] %v52
  %56 = vst [vmem:[%s54 + $0x6] sm:$0x3] %v53
  %v57 = vmul.f32 %v35, %v20
  %v58 = vmul.f32 %v35, %v21
  %v59 = vadd.f32 %v57, %v33
  %v60 = vadd.f32 %v58, %v34
  %v61 = vmax.f32 %v59, 0.0
  %v62 = vmax.f32 %v60, 0.0
  %v63 = vmin.f32 %v61, 1.0
  %v64 = vmin.f32 %v62, 1.0
  %s65 = scalar_lea.vmem %s2, 4
  %66 = vst [vmem:[%s65] sm:$0x3] %v63
  %67 = vst [vmem:[%s65 + $0x6] sm:$0x3] %v64
  // Predicated region
  $region10: #{branch_1_fun.1} parent=0 // pred_check
    _
  $region11: #{branch_1_fun.1} parent=0 // pred_check_branch
    %69 = sbr.rel (0) target = $region13
  $region12: #{branch_1_fun.1} parent=0 // pred_region
    _
  $region13: #{branch_1_fun.1} parent=0 // pred_fallthru
    _
  // Predicated region
  $region14: #{branch_1_fun.1} parent=0 // pred_check
    _
  $region15: #{branch_1_fun.1} parent=0 // pred_check_branch
    %71 = sbr.rel (0) target = $region17
  $region16: #{branch_1_fun.1} parent=0 // pred_region
    _
  $region17: #{branch_1_fun.1} parent=0 // pred_fallthru
    _

</llo_original>
